<compile_context>
chip_gen: v5e
topology: v5e:2x2
jax: 0.10.0
libtpu: 0.0.40
codegen_flags: <defaults>
</compile_context>

<pallas_src>
import jax
import jax.numpy as jnp
from jax.experimental import pallas as pl
from jax.experimental.pallas import tpu as pltpu

# ---- static config (resnet18 / EMBEDDING_bool=True branch) ----
FC_INPUT_FEATURES = 512   # resnet18 fc_input_features
E = 128                   # embedding dim for resnet18
N_CENTERS = 4
N_OUT_PAD = 128           # lane-dense classifier width (logits live in [:, :N_CENTERS])
P_DROP = 0.2
TILE_M = 512              # rows per grid step (<2 MiB double-buffered; safe on v7x 64 MiB VMEM)
SUBLANE = 8


def _mlp_dropout_kernel(x_ref, w1_ref, b1_ref, mask_ref, w2_ref, b2_ref, o_ref):
    # x_ref   : (tile_m, F_IN)    bf16
    # w1_ref  : (F_IN, E)         bf16   (pre-transposed)
    # b1_ref  : (1, E)            f32
    # mask_ref: (tile_m, E)       bf16   0/1 keep mask (1/(1-p) folded into w2)
    # w2_ref  : (E, N_OUT_PAD)    bf16   (pre-transposed, pre-scaled, zero-padded cols)
    # b2_ref  : (1, N_OUT_PAD)    f32
    # o_ref   : (tile_m, N_OUT_PAD) f32
    emb = jnp.dot(x_ref[...], w1_ref[...],
                  preferred_element_type=jnp.float32) + b1_ref[...]
    emb = emb * mask_ref[...].astype(jnp.float32)
    out = jnp.dot(emb.astype(jnp.bfloat16), w2_ref[...],
                  preferred_element_type=jnp.float32) + b2_ref[...]
    o_ref[...] = out.astype(o_ref.dtype)


def _mlp_kernel(x_ref, w1_ref, b1_ref, w2_ref, b2_ref, o_ref):
    # eval-mode variant (no dropout mask input at all)
    emb = jnp.dot(x_ref[...], w1_ref[...],
                  preferred_element_type=jnp.float32) + b1_ref[...]
    out = jnp.dot(emb.astype(jnp.bfloat16), w2_ref[...],
                  preferred_element_type=jnp.float32) + b2_ref[...]
    o_ref[...] = out.astype(o_ref.dtype)


def domain_predictor_forward(x, w1, b1, w2, b2, *, dropout_key=None):
    """x: (N, F_IN) f32. w1: (E, F_IN), b1: (E,), w2: (N_CENTERS, E), b2: (N_CENTERS,).

    dropout_key=None -> eval mode (no dropout); a PRNGKey -> training-mode
    Dropout(p=0.2), matching the PyTorch forward() (which is always training-mode).
    """
    n, f_in = x.shape
    assert f_in == FC_INPUT_FEATURES
    apply_dropout = dropout_key is not None

    # Row tile: large (512) for big batches; shrink (8-aligned) for tiny ones so
    # the pad copy is at most a few rows.
    tile_m = TILE_M if n >= TILE_M else max(SUBLANE, ((n + SUBLANE - 1) // SUBLANE) * SUBLANE)
    n_pad = ((n + tile_m - 1) // tile_m) * tile_m
    grid = (n_pad // tile_m,)

    x_bf = x.astype(jnp.bfloat16)
    keep = None
    if apply_dropout:
        keep = jax.random.bernoulli(dropout_key, 1.0 - P_DROP, (n, E)).astype(jnp.bfloat16)
    if n_pad != n:
        # Pads only the remainder rows of the last tile; skipped entirely when
        # the batch already divides the tile.
        # TODO(synk): jnp.pad still materializes one copy of x when padding is needed.
        x_bf = jnp.pad(x_bf, ((0, n_pad - n), (0, 0)))
        if apply_dropout:
            keep = jnp.pad(keep, ((0, n_pad - n), (0, 0)))

    # Pre-transpose weights -> (in, out); bf16 for the MXU, f32 biases.
    w1_t = jnp.asarray(w1, jnp.float32).T.astype(jnp.bfloat16)            # (F_IN, E)
    b1_r = jnp.asarray(b1, jnp.float32).reshape(1, E)

    w2_t = jnp.asarray(w2, jnp.float32).T                                 # (E, N_CENTERS)
    if apply_dropout:
        w2_t = w2_t * (1.0 / (1.0 - P_DROP))                              # fold dropout scale
    w2_p = (jnp.zeros((E, N_OUT_PAD), jnp.float32)
            .at[:, :N_CENTERS].set(w2_t).astype(jnp.bfloat16))            # lane-dense
    b2_p = (jnp.zeros((1, N_OUT_PAD), jnp.float32)
            .at[:, :N_CENTERS].set(jnp.asarray(b2, jnp.float32).reshape(1, N_CENTERS)))

    x_spec = pl.BlockSpec((tile_m, FC_INPUT_FEATURES), lambda i: (i, 0))
    mask_spec = pl.BlockSpec((tile_m, E), lambda i: (i, 0))
    w1_spec = pl.BlockSpec((FC_INPUT_FEATURES, E), lambda i: (0, 0))
    b1_spec = pl.BlockSpec((1, E), lambda i: (0, 0))
    w2_spec = pl.BlockSpec((E, N_OUT_PAD), lambda i: (0, 0))
    b2_spec = pl.BlockSpec((1, N_OUT_PAD), lambda i: (0, 0))
    out_spec = pl.BlockSpec((tile_m, N_OUT_PAD), lambda i: (i, 0))

    if apply_dropout:
        kernel = _mlp_dropout_kernel
        in_specs = [x_spec, w1_spec, b1_spec, mask_spec, w2_spec, b2_spec]
        args = (x_bf, w1_t, b1_r, keep, w2_p, b2_p)
    else:
        kernel = _mlp_kernel
        in_specs = [x_spec, w1_spec, b1_spec, w2_spec, b2_spec]
        args = (x_bf, w1_t, b1_r, w2_p, b2_p)

    out_p = pl.pallas_call(
        kernel,
        out_shape=jax.ShapeDtypeStruct((n_pad, N_OUT_PAD), jnp.float32),
        grid=grid,
        in_specs=in_specs,
        out_specs=out_spec,
        compiler_params=pltpu.CompilerParams(dimension_semantics=("parallel",)),
    )(*args)

    return out_p[:n, :N_CENTERS]


def init_params(key):
    """Deterministic init mimicking PyTorch nn.Linear default (U(-1/sqrt(fan_in), +))."""
    k1, k2, k3, k4 = jax.random.split(key, 4)
    bound1 = 1.0 / jnp.sqrt(float(FC_INPUT_FEATURES))
    bound2 = 1.0 / jnp.sqrt(float(E))
    w1 = jax.random.uniform(k1, (E, FC_INPUT_FEATURES), jnp.float32, -bound1, bound1)
    b1 = jax.random.uniform(k2, (E,), jnp.float32, -bound1, bound1)
    w2 = jax.random.uniform(k3, (N_CENTERS, E), jnp.float32, -bound2, bound2)
    b2 = jax.random.uniform(k4, (N_CENTERS,), jnp.float32, -bound2, bound2)
    return w1, b1, w2, b2


if __name__ == "__main__":
    key = jax.random.PRNGKey(0)
    k_params, k_x, k_drop = jax.random.split(key, 3)
    w1, b1, w2, b2 = init_params(k_params)

    batch = 2
    x = jax.random.normal(k_x, (batch, FC_INPUT_FEATURES), jnp.float32)

    # Training-mode forward (dropout active, as in the PyTorch forward()).
    domain_prob = domain_predictor_forward(x, w1, b1, w2, b2, dropout_key=k_drop)
    domain_prob = jax.block_until_ready(domain_prob)

    assert domain_prob.shape == (batch, N_CENTERS)
    assert domain_prob.dtype == jnp.float32
    assert bool(jnp.all(jnp.isfinite(domain_prob)))

    # Pure-JAX reference using the identical dropout mask (same key / shape / p).
    keep_ref = jax.random.bernoulli(k_drop, 1.0 - P_DROP, (batch, E)).astype(jnp.float32)
    emb_ref = x @ w1.T + b1
    emb_ref = emb_ref * keep_ref * (1.0 / (1.0 - P_DROP))
    ref = emb_ref @ w2.T + b2
    assert bool(jnp.allclose(domain_prob, ref, atol=5e-2, rtol=5e-2))

    # Eval-mode path (no dropout) also runs.
    eval_out = jax.block_until_ready(domain_predictor_forward(x, w1, b1, w2, b2))
    assert eval_out.shape == (batch, N_CENTERS)
    assert bool(jnp.all(jnp.isfinite(eval_out)))

    print("KERNEL_OK")
</pallas_src>

<mosaic_0001>
module attributes {stable_mosaic.version = 11 : i64} {
  func.func @_mlp_dropout_kernel(%arg0: i32, %arg1: memref<8x512xbf16, #tpu.memory_space<vmem>>, %arg2: memref<512x128xbf16, #tpu.memory_space<vmem>>, %arg3: memref<1x128xf32, #tpu.memory_space<vmem>>, %arg4: memref<8x128xbf16, #tpu.memory_space<vmem>>, %arg5: memref<128x128xbf16, #tpu.memory_space<vmem>>, %arg6: memref<1x128xf32, #tpu.memory_space<vmem>>, %arg7: memref<8x128xf32, #tpu.memory_space<vmem>>) attributes {dimension_semantics = [#tpu.dimension_semantics<parallel>], iteration_bounds = array<i64: 1>, scalar_prefetch = 0 : i64, scratch_operands = 0 : i64, tpu.core_type = #tpu.core_type<tc>, window_params = [{transform_indices = @transform_0, window_bounds = array<i64: 8, 512>}, {pipeline_mode = #tpu.pipeline_mode<synchronous>, transform_indices = @transform_1, window_bounds = array<i64: 512, 128>}, {pipeline_mode = #tpu.pipeline_mode<synchronous>, transform_indices = @transform_2, window_bounds = array<i64: 1, 128>}, {transform_indices = @transform_3, window_bounds = array<i64: 8, 128>}, {pipeline_mode = #tpu.pipeline_mode<synchronous>, transform_indices = @transform_4, window_bounds = array<i64: 128, 128>}, {pipeline_mode = #tpu.pipeline_mode<synchronous>, transform_indices = @transform_5, window_bounds = array<i64: 1, 128>}, {transform_indices = @transform_6, window_bounds = array<i64: 8, 128>}]} {
    %c0 = arith.constant 0 : index
    %c0_0 = arith.constant 0 : index
    %0 = vector.load %arg1[%c0, %c0_0] : memref<8x512xbf16, #tpu.memory_space<vmem>>, vector<8x512xbf16>
    %c0_1 = arith.constant 0 : index
    %c0_2 = arith.constant 0 : index
    %1 = vector.load %arg2[%c0_1, %c0_2] : memref<512x128xbf16, #tpu.memory_space<vmem>>, vector<512x128xbf16>
    %cst = arith.constant dense<0.000000e+00> : vector<8x128xf32>
    %2 = tpu.matmul %0, %1, %cst {dimension_numbers = #tpu.dot_dimension_numbers<[1], [0], [0], [1], [0, 0, 1, 1], [], []>} : vector<8x512xbf16>, vector<512x128xbf16>, vector<8x128xf32> -> vector<8x128xf32>
    %c0_3 = arith.constant 0 : index
    %c0_4 = arith.constant 0 : index
    %3 = vector.load %arg3[%c0_3, %c0_4] : memref<1x128xf32, #tpu.memory_space<vmem>>, vector<1x128xf32>
    %4 = vector.broadcast %3 : vector<1x128xf32> to vector<8x128xf32>
    %5 = arith.addf %2, %4 : vector<8x128xf32>
    %c0_5 = arith.constant 0 : index
    %c0_6 = arith.constant 0 : index
    %6 = vector.load %arg4[%c0_5, %c0_6] : memref<8x128xbf16, #tpu.memory_space<vmem>>, vector<8x128xbf16>
    %7 = arith.extf %6 : vector<8x128xbf16> to vector<8x128xf32>
    %8 = arith.mulf %5, %7 : vector<8x128xf32>
    %9 = arith.truncf %8 : vector<8x128xf32> to vector<8x128xbf16>
    %c0_7 = arith.constant 0 : index
    %c0_8 = arith.constant 0 : index
    %10 = vector.load %arg5[%c0_7, %c0_8] : memref<128x128xbf16, #tpu.memory_space<vmem>>, vector<128x128xbf16>
    %cst_9 = arith.constant dense<0.000000e+00> : vector<8x128xf32>
    %11 = tpu.matmul %9, %10, %cst_9 {dimension_numbers = #tpu.dot_dimension_numbers<[1], [0], [0], [1], [0, 0, 1, 1], [], []>} : vector<8x128xbf16>, vector<128x128xbf16>, vector<8x128xf32> -> vector<8x128xf32>
    %c0_10 = arith.constant 0 : index
    %c0_11 = arith.constant 0 : index
    %12 = vector.load %arg6[%c0_10, %c0_11] : memref<1x128xf32, #tpu.memory_space<vmem>>, vector<1x128xf32>
    %13 = vector.broadcast %12 : vector<1x128xf32> to vector<8x128xf32>
    %14 = arith.addf %11, %13 : vector<8x128xf32>
    %c0_12 = arith.constant 0 : index
    %c0_13 = arith.constant 0 : index
    %15 = vector.load %arg7[%c0_12, %c0_13] : memref<8x128xf32, #tpu.memory_space<vmem>>, vector<8x128xf32>
    tpu.vector_store %arg7[%c0_12, %c0_13], %14 {strides = array<i32>} : memref<8x128xf32, #tpu.memory_space<vmem>>, vector<8x128xf32>,
    return
  }
  func.func @transform_0(%arg0: i32) -> (i32, i32) {
    %c0_i32 = arith.constant 0 : i32
    %c0_i32_0 = arith.constant 0 : i32
    return %arg0, %c0_i32 : i32, i32
  }
  func.func @transform_1(%arg0: i32) -> (i32, i32) {
    %c0_i32 = arith.constant 0 : i32
    %c0_i32_0 = arith.constant 0 : i32
    %c0_i32_1 = arith.constant 0 : i32
    return %c0_i32, %c0_i32_0 : i32, i32
  }
  func.func @transform_2(%arg0: i32) -> (i32, i32) {
    %c0_i32 = arith.constant 0 : i32
    %c0_i32_0 = arith.constant 0 : i32
    %c0_i32_1 = arith.constant 0 : i32
    return %c0_i32, %c0_i32_0 : i32, i32
  }
  func.func @transform_3(%arg0: i32) -> (i32, i32) {
    %c0_i32 = arith.constant 0 : i32
    %c0_i32_0 = arith.constant 0 : i32
    return %arg0, %c0_i32 : i32, i32
  }
  func.func @transform_4(%arg0: i32) -> (i32, i32) {
    %c0_i32 = arith.constant 0 : i32
    %c0_i32_0 = arith.constant 0 : i32
    %c0_i32_1 = arith.constant 0 : i32
    return %c0_i32, %c0_i32_0 : i32, i32
  }
  func.func @transform_5(%arg0: i32) -> (i32, i32) {
    %c0_i32 = arith.constant 0 : i32
    %c0_i32_0 = arith.constant 0 : i32
    %c0_i32_1 = arith.constant 0 : i32
    return %c0_i32, %c0_i32_0 : i32, i32
  }
  func.func @transform_6(%arg0: i32) -> (i32, i32) {
    %c0_i32 = arith.constant 0 : i32
    %c0_i32_0 = arith.constant 0 : i32
    return %arg0, %c0_i32 : i32, i32
  }
}

</mosaic_0001>

<llo_original>
// kernel: tpu_custom_call.1
$region0: #{tpu_custom_call.1}
  #allocation0 [shape = 'u32[]', space=smem, size = 0x4, offset = 0x4, fixed_abs, tag = 'smem constant byte address 0x4 - core index']
  #allocation1 [shape = 'u32[72,128]{1,0:T(1,128)}', space=vmem, size = 0x9000, scoped, tag = 'internal scratch']
  %s0 = inlined_call_operand.hbm [shape: bf16[8,512], index: 0, kind: input, shape index: {}]
  %s1 = inlined_call_operand.hbm [shape: bf16[512,128], index: 1, kind: input, shape index: {}]
  %s2 = inlined_call_operand.vmem [shape: f32[1,128], index: 2, kind: input, shape index: {}]
  %s3 = inlined_call_operand.hbm [shape: bf16[8,128], index: 3, kind: input, shape index: {}]
  %s4 = inlined_call_operand.hbm [shape: bf16[128,128], index: 4, kind: input, shape index: {}]
  %s5 = inlined_call_operand.vmem [shape: f32[1,128], index: 5, kind: input, shape index: {}]
  %s6 = inlined_call_operand.hbm [shape: f32[8,128], index: 6, kind: output, shape index: {}]
  %s7 = sld [smem:[#allocation0]]
  $region50: #{tpu_custom_call.1} parent=0
    _
  %s9 = ssub.s32 1, %s7
  %s10 = scalar_select 0, %s9, %s7
  $region1: #{tpu_custom_call.1} parent=0
    #allocation2 [shape = 'u8[8192]{0}', space=vmem, size = 0x2000, scoped, tag = 'input window, operand 0, single buffered']
    #allocation3 [shape = 's32[1]{0}', space=sflag, size = 0x4, scoped, tag = 'scoped memory for tpu_custom_call.1']
    #allocation4 [shape = 's32[1]{0}', space=sflag, size = 0x4, scoped, tag = 'scoped memory for tpu_custom_call.1']
    #allocation5 [shape = 'u8[131072]{0}', space=vmem, size = 0x20000, scoped, tag = 'input window, operand 1, single buffered']
    #allocation6 [shape = 's32[1]{0}', space=sflag, size = 0x4, scoped, tag = 'scoped memory for tpu_custom_call.1']
    #allocation7 [shape = 'u8[2048]{0}', space=vmem, size = 0x800, scoped, tag = 'input window, operand 3, single buffered']
    #allocation8 [shape = 'u8[32768]{0}', space=vmem, size = 0x8000, scoped, tag = 'input window, operand 4, single buffered']
    #allocation9 [shape = 's32[1]{0}', space=sflag, size = 0x4, scoped, tag = 'scoped memory for tpu_custom_call.1']
    #allocation10 [shape = 'u8[4096]{0}', space=vmem, size = 0x1000, scoped, tag = 'output window, operand 0, single buffered']
    %11 = vsyncpa [#allocation3], 0
    %12 = vsyncpa [#allocation6], 0
    %13 = vsyncpa [#allocation9], 0
    %14 = vsyncpa [#allocation4], 0
    // Predicated region
    $region2: #{tpu_custom_call.1} parent=1 // pred_check
      _
    $region3: #{tpu_custom_call.1} parent=1 // pred_check_branch
      %16 = sbr.rel (0) target = $region5
    $region4: #{tpu_custom_call.1} parent=1 // pred_region
      %18 = vsyncadd [#allocation3], 0
      %s20 = sshll.u32 %s0, 4
      %s21 = int_to_ptr.hbm [resolvable:$true] %s20
      %s22 = sshll.u32 [#allocation2], 4
      %s23 = int_to_ptr.vmem [resolvable:$true] %s22
      %25 = dma.hbm_to_vmem [thread:$0]  %s21, 256, %s23, [#allocation3]
    $region5: #{tpu_custom_call.1} parent=1 // pred_fallthru
      _
    // Predicated region
    $region6: #{tpu_custom_call.1} parent=1 // pred_check
      _
    $region7: #{tpu_custom_call.1} parent=1 // pred_check_branch
      %27 = sbr.rel (0) target = $region9
    $region8: #{tpu_custom_call.1} parent=1 // pred_region
      %29 = vsyncadd [#allocation6], 0
      %s30 = sshll.u32 %s1, 4
      %s31 = int_to_ptr.hbm [resolvable:$true] %s30
      %s32 = sshll.u32 [#allocation5], 4
      %s33 = int_to_ptr.vmem [resolvable:$true] %s32
      %38 = dma.hbm_to_vmem [thread:$0]  %s31, 4096, %s33, [#allocation6], 64, 64, 4
    $region9: #{tpu_custom_call.1} parent=1 // pred_fallthru
      _
    // Predicated region
    $region10: #{tpu_custom_call.1} parent=1 // pred_check
      _
    $region11: #{tpu_custom_call.1} parent=1 // pred_check_branch
      %40 = sbr.rel (0) target = $region13
    $region12: #{tpu_custom_call.1} parent=1 // pred_region
      _
    $region13: #{tpu_custom_call.1} parent=1 // pred_fallthru
      _
    // Predicated region
    $region14: #{tpu_custom_call.1} parent=1 // pred_check
      _
    $region15: #{tpu_custom_call.1} parent=1 // pred_check_branch
      %42 = sbr.rel (0) target = $region17
    $region16: #{tpu_custom_call.1} parent=1 // pred_region
      %44 = vsyncadd [#allocation6], 0
      %s46 = sshll.u32 %s3, 4
      %s47 = int_to_ptr.hbm [resolvable:$true] %s46
      %s48 = sshll.u32 [#allocation7], 4
      %s49 = int_to_ptr.vmem [resolvable:$true] %s48
      %51 = dma.hbm_to_vmem [thread:$0]  %s47, 64, %s49, [#allocation6]
    $region17: #{tpu_custom_call.1} parent=1 // pred_fallthru
      _
    // Predicated region
    $region18: #{tpu_custom_call.1} parent=1 // pred_check
      _
    $region19: #{tpu_custom_call.1} parent=1 // pred_check_branch
      %53 = sbr.rel (0) target = $region21
    $region20: #{tpu_custom_call.1} parent=1 // pred_region
      %55 = vsyncadd [#allocation9], 0
      %s56 = sshll.u32 %s4, 4
      %s57 = int_to_ptr.hbm [resolvable:$true] %s56
      %s58 = sshll.u32 [#allocation8], 4
      %s59 = int_to_ptr.vmem [resolvable:$true] %s58
      %64 = dma.hbm_to_vmem [thread:$0]  %s57, 1024, %s59, [#allocation9], 64, 64, 4
    $region21: #{tpu_custom_call.1} parent=1 // pred_fallthru
      _
    // Predicated region
    $region22: #{tpu_custom_call.1} parent=1 // pred_check
      _
    $region23: #{tpu_custom_call.1} parent=1 // pred_check_branch
      %66 = sbr.rel (0) target = $region25
    $region24: #{tpu_custom_call.1} parent=1 // pred_region
      _
    $region25: #{tpu_custom_call.1} parent=1 // pred_fallthru
      _
    // Predicated region
    $region26: #{tpu_custom_call.1} parent=1 // pred_check
      _
    $region27: #{tpu_custom_call.1} parent=1 // pred_check_branch
      %68 = sbr.rel (0) target = $region29
    $region28: #{tpu_custom_call.1} parent=1 // pred_region
      %70 = dma.done [#allocation3], 256
    $region29: #{tpu_custom_call.1} parent=1 // pred_fallthru
      _
    // Predicated region
    $region30: #{tpu_custom_call.1} parent=1 // pred_check
      _
    $region31: #{tpu_custom_call.1} parent=1 // pred_check_branch
      %72 = sbr.rel (0) target = $region33
    $region32: #{tpu_custom_call.1} parent=1 // pred_region
      %74 = dma.done [#allocation6], 4096
    $region33: #{tpu_custom_call.1} parent=1 // pred_fallthru
      _
    // Predicated region
    $region34: #{tpu_custom_call.1} parent=1 // pred_check
      _
    $region35: #{tpu_custom_call.1} parent=1 // pred_check_branch
      %76 = sbr.rel (0) target = $region37
    $region36: #{tpu_custom_call.1} parent=1 // pred_region
      %78 = dma.done [#allocation6], 64
    $region37: #{tpu_custom_call.1} parent=1 // pred_fallthru
      _
    // Predicated region
    $region38: #{tpu_custom_call.1} parent=1 // pred_check
      _
    $region39: #{tpu_custom_call.1} parent=1 // pred_check_branch
      %80 = sbr.rel (0) target = $region41
    $region40: #{tpu_custom_call.1} parent=1 // pred_region
      %82 = dma.done [#allocation9], 1024
    $region41: #{tpu_custom_call.1} parent=1 // pred_fallthru
      _
    %v83 = vld [vmem:[#allocation2] sm:$0xff]
    %v84 = vld [vmem:[#allocation2 + $0x8] sm:$0xff]
    %v85 = vld [vmem:[#allocation5] sm:$0xf]
    %v86 = vld [vmem:[#allocation5 + $0x4] sm:$0xf]
    %v87 = vld [vmem:[#allocation5 + $0x8] sm:$0xf]
    %v88 = vld [vmem:[#allocation5 + $0xc] sm:$0xf]
    %v89 = vld [vmem:[#allocation5 + $0x10] sm:$0xf]
    %v90 = vld [vmem:[#allocation5 + $0x14] sm:$0xf]
    %v91 = vld [vmem:[#allocation5 + $0x18] sm:$0xf]
    %v92 = vld [vmem:[#allocation5 + $0x1c] sm:$0xf]
    %v93 = vld [vmem:[#allocation5 + $0x20] sm:$0xf]
    %v94 = vld [vmem:[#allocation5 + $0x24] sm:$0xf]
    %v95 = vld [vmem:[#allocation5 + $0x28] sm:$0xf]
    %v96 = vld [vmem:[#allocation5 + $0x2c] sm:$0xf]
    %v97 = vld [vmem:[#allocation5 + $0x30] sm:$0xf]
    %v98 = vld [vmem:[#allocation5 + $0x34] sm:$0xf]
    %v99 = vld [vmem:[#allocation5 + $0x38] sm:$0xf]
    %v100 = vld [vmem:[#allocation5 + $0x3c] sm:$0xf]
    %v101 = vld [vmem:[#allocation5 + $0x40] sm:$0xf]
    %v102 = vld [vmem:[#allocation5 + $0x44] sm:$0xf]
    %v103 = vld [vmem:[#allocation5 + $0x48] sm:$0xf]
    %v104 = vld [vmem:[#allocation5 + $0x4c] sm:$0xf]
    %v105 = vld [vmem:[#allocation5 + $0x50] sm:$0xf]
    %v106 = vld [vmem:[#allocation5 + $0x54] sm:$0xf]
    %v107 = vld [vmem:[#allocation5 + $0x58] sm:$0xf]
    %v108 = vld [vmem:[#allocation5 + $0x5c] sm:$0xf]
    %v109 = vld [vmem:[#allocation5 + $0x60] sm:$0xf]
    %v110 = vld [vmem:[#allocation5 + $0x64] sm:$0xf]
    %v111 = vld [vmem:[#allocation5 + $0x68] sm:$0xf]
    %v112 = vld [vmem:[#allocation5 + $0x6c] sm:$0xf]
    %v113 = vld [vmem:[#allocation5 + $0x70] sm:$0xf]
    %v114 = vld [vmem:[#allocation5 + $0x74] sm:$0xf]
    %v115 = vld [vmem:[#allocation5 + $0x78] sm:$0xf]
    %v116 = vld [vmem:[#allocation5 + $0x7c] sm:$0xf]
    %v117 = vld [vmem:[#allocation5 + $0x80] sm:$0xf]
    %v118 = vld [vmem:[#allocation5 + $0x84] sm:$0xf]
    %v119 = vld [vmem:[#allocation5 + $0x88] sm:$0xf]
    %v120 = vld [vmem:[#allocation5 + $0x8c] sm:$0xf]
    %v121 = vld [vmem:[#allocation5 + $0x90] sm:$0xf]
    %v122 = vld [vmem:[#allocation5 + $0x94] sm:$0xf]
    %v123 = vld [vmem:[#allocation5 + $0x98] sm:$0xf]
    %v124 = vld [vmem:[#allocation5 + $0x9c] sm:$0xf]
    %v125 = vld [vmem:[#allocation5 + $0xa0] sm:$0xf]
    %v126 = vld [vmem:[#allocation5 + $0xa4] sm:$0xf]
    %v127 = vld [vmem:[#allocation5 + $0xa8] sm:$0xf]
    %v128 = vld [vmem:[#allocation5 + $0xac] sm:$0xf]
    %v129 = vld [vmem:[#allocation5 + $0xb0] sm:$0xf]
    %v130 = vld [vmem:[#allocation5 + $0xb4] sm:$0xf]
    %v131 = vld [vmem:[#allocation5 + $0xb8] sm:$0xf]
    %v132 = vld [vmem:[#allocation5 + $0xbc] sm:$0xf]
    %v133 = vld [vmem:[#allocation5 + $0xc0] sm:$0xf]
    %v134 = vld [vmem:[#allocation5 + $0xc4] sm:$0xf]
    %v135 = vld [vmem:[#allocation5 + $0xc8] sm:$0xf]
    %v136 = vld [vmem:[#allocation5 + $0xcc] sm:$0xf]
    %v137 = vld [vmem:[#allocation5 + $0xd0] sm:$0xf]
    %v138 = vld [vmem:[#allocation5 + $0xd4] sm:$0xf]
    %v139 = vld [vmem:[#allocation5 + $0xd8] sm:$0xf]
    %v140 = vld [vmem:[#allocation5 + $0xdc] sm:$0xf]
    %v141 = vld [vmem:[#allocation5 + $0xe0] sm:$0xf]
    %v142 = vld [vmem:[#allocation5 + $0xe4] sm:$0xf]
    %v143 = vld [vmem:[#allocation5 + $0xe8] sm:$0xf]
    %v144 = vld [vmem:[#allocation5 + $0xec] sm:$0xf]
    %v145 = vld [vmem:[#allocation5 + $0xf0] sm:$0xf]
    %v146 = vld [vmem:[#allocation5 + $0xf4] sm:$0xf]
    %v147 = vld [vmem:[#allocation5 + $0xf8] sm:$0xf]
    %v148 = vld [vmem:[#allocation5 + $0xfc] sm:$0xf]
    %v149 = vld [vmem:[%s2] sm:$0x1]
    %v151 = vperm.slane %v149, 0
    %v155 = vunpack.c.l.b16 %v83
    %v156 = vunpack.c.h.b16 %v83
    %v157 = vunpack.c.l.b16 %v84
    %v158 = vunpack.c.h.b16 %v84
    %v159 = vpack.c.b16 %v155, %v155
    %v160 = vpack.c.b16 %v156, %v156
    %v161 = vpack.c.b16 %v157, %v157
    %v162 = vpack.c.b16 %v158, %v158
    %v231 = vunpack.c.l.b16 %v85
    %v232 = vunpack.c.l.b16 %v86
    %v233 = vunpack.c.l.b16 %v87
    %v234 = vunpack.c.l.b16 %v88
    %v235 = vunpack.c.l.b16 %v89
    %v236 = vunpack.c.l.b16 %v90
    %v237 = vunpack.c.l.b16 %v91
    %v238 = vunpack.c.l.b16 %v92
    %v239 = vunpack.c.l.b16 %v93
    %v240 = vunpack.c.l.b16 %v94
    %v241 = vunpack.c.l.b16 %v95
    %v242 = vunpack.c.l.b16 %v96
    %v243 = vunpack.c.l.b16 %v97
    %v244 = vunpack.c.l.b16 %v98
    %v245 = vunpack.c.l.b16 %v99
    %v246 = vunpack.c.l.b16 %v100
    %v247 = vunpack.c.l.b16 %v101
    %v248 = vunpack.c.l.b16 %v102
    %v249 = vunpack.c.l.b16 %v103
    %v250 = vunpack.c.l.b16 %v104
    %v251 = vunpack.c.l.b16 %v105
    %v252 = vunpack.c.l.b16 %v106
    %v253 = vunpack.c.l.b16 %v107
    %v254 = vunpack.c.l.b16 %v108
    %v255 = vunpack.c.l.b16 %v109
    %v256 = vunpack.c.l.b16 %v110
    %v257 = vunpack.c.l.b16 %v111
    %v258 = vunpack.c.l.b16 %v112
    %v259 = vunpack.c.l.b16 %v113
    %v260 = vunpack.c.l.b16 %v114
    %v261 = vunpack.c.l.b16 %v115
    %v262 = vunpack.c.l.b16 %v116
    %v263 = vunpack.c.l.b16 %v117
    %v264 = vunpack.c.l.b16 %v118
    %v265 = vunpack.c.l.b16 %v119
    %v266 = vunpack.c.l.b16 %v120
    %v267 = vunpack.c.l.b16 %v121
    %v268 = vunpack.c.l.b16 %v122
    %v269 = vunpack.c.l.b16 %v123
    %v270 = vunpack.c.l.b16 %v124
    %v271 = vunpack.c.l.b16 %v125
    %v272 = vunpack.c.l.b16 %v126
    %v273 = vunpack.c.l.b16 %v127
    %v274 = vunpack.c.l.b16 %v128
    %v275 = vunpack.c.l.b16 %v129
    %v276 = vunpack.c.l.b16 %v130
    %v277 = vunpack.c.l.b16 %v131
    %v278 = vunpack.c.l.b16 %v132
    %v279 = vunpack.c.l.b16 %v133
    %v280 = vunpack.c.l.b16 %v134
    %v281 = vunpack.c.l.b16 %v135
    %v282 = vunpack.c.l.b16 %v136
    %v283 = vunpack.c.l.b16 %v137
    %v284 = vunpack.c.l.b16 %v138
    %v285 = vunpack.c.l.b16 %v139
    %v286 = vunpack.c.l.b16 %v140
    %v287 = vunpack.c.l.b16 %v141
    %v288 = vunpack.c.l.b16 %v142
    %v289 = vunpack.c.l.b16 %v143
    %v290 = vunpack.c.l.b16 %v144
    %v291 = vunpack.c.l.b16 %v145
    %v292 = vunpack.c.l.b16 %v146
    %v293 = vunpack.c.l.b16 %v147
    %v294 = vunpack.c.l.b16 %v148
    %v295 = vpack.c.b16 %v232, %v231
    %v296 = vpack.c.b16 %v234, %v233
    %v297 = vpack.c.b16 %v236, %v235
    %v298 = vpack.c.b16 %v238, %v237
    %v299 = vpack.c.b16 %v240, %v239
    %v300 = vpack.c.b16 %v242, %v241
    %v301 = vpack.c.b16 %v244, %v243
    %v302 = vpack.c.b16 %v246, %v245
    %v303 = vpack.c.b16 %v248, %v247
    %v304 = vpack.c.b16 %v250, %v249
    %v305 = vpack.c.b16 %v252, %v251
    %v306 = vpack.c.b16 %v254, %v253
    %v307 = vpack.c.b16 %v256, %v255
    %v308 = vpack.c.b16 %v258, %v257
    %v309 = vpack.c.b16 %v260, %v259
    %v310 = vpack.c.b16 %v262, %v261
    %v311 = vpack.c.b16 %v264, %v263
    %v312 = vpack.c.b16 %v266, %v265
    %v313 = vpack.c.b16 %v268, %v267
    %v314 = vpack.c.b16 %v270, %v269
    %v315 = vpack.c.b16 %v272, %v271
    %v316 = vpack.c.b16 %v274, %v273
    %v317 = vpack.c.b16 %v276, %v275
    %v318 = vpack.c.b16 %v278, %v277
    %v319 = vpack.c.b16 %v280, %v279
    %v320 = vpack.c.b16 %v282, %v281
    %v321 = vpack.c.b16 %v284, %v283
    %v322 = vpack.c.b16 %v286, %v285
    %v323 = vpack.c.b16 %v288, %v287
    %v324 = vpack.c.b16 %v290, %v289
    %v325 = vpack.c.b16 %v292, %v291
    %v326 = vpack.c.b16 %v294, %v293
    %359 = vmatpush.bf16.msra.mxu0 %v302
    %360 = vmatpush.bf16.msra.mxu0 %v301
    %361 = vmatpush.bf16.msra.mxu0 %v300
    %362 = vmatpush.bf16.msra.mxu0 %v299
    %363 = vmatpush.bf16.msra.mxu0 %v298
    %364 = vmatpush.bf16.msra.mxu0 %v297
    %365 = vmatpush.bf16.msra.mxu0 %v296
    %366 = vmatpush.bf16.msra.mxu0 %v295
    %367 = vmatmul.bf16.gmra.mxu0 %v159
    %v368 = vpop.f32.mrf.mxu0
    %v369 = vadd.f32 %v151, %v368
    %v370 = vpop.f32.mrf.mxu0
    %371 = vdwg.mxu0
    %372 = vmatpush.bf16.msra.mxu0 %v310
    %373 = vmatpush.bf16.msra.mxu0 %v309
    %374 = vmatpush.bf16.msra.mxu0 %v308
    %375 = vmatpush.bf16.msra.mxu0 %v307
    %376 = vmatpush.bf16.msra.mxu0 %v306
    %377 = vmatpush.bf16.msra.mxu0 %v305
    %378 = vmatpush.bf16.msra.mxu0 %v304
    %379 = vmatpush.bf16.msra.mxu0 %v303
    %380 = vmatmul.bf16.gmra.mxu0 %v160
    %v381 = vpop.f32.mrf.mxu0
    %v382 = vadd.f32 %v369, %v381
    %v383 = vpop.f32.mrf.mxu0
    %384 = vdwg.mxu0
    %385 = vmatpush.bf16.msra.mxu0 %v318
    %386 = vmatpush.bf16.msra.mxu0 %v317
    %387 = vmatpush.bf16.msra.mxu0 %v316
    %388 = vmatpush.bf16.msra.mxu0 %v315
    %389 = vmatpush.bf16.msra.mxu0 %v314
    %390 = vmatpush.bf16.msra.mxu0 %v313
    %391 = vmatpush.bf16.msra.mxu0 %v312
    %392 = vmatpush.bf16.msra.mxu0 %v311
    %393 = vmatmul.bf16.gmra.mxu0 %v161
    %v394 = vpop.f32.mrf.mxu0
    %v395 = vadd.f32 %v382, %v394
    %v396 = vpop.f32.mrf.mxu0
    %397 = vdwg.mxu0
    %398 = vmatpush.bf16.msra.mxu0 %v326
    %399 = vmatpush.bf16.msra.mxu0 %v325
    %400 = vmatpush.bf16.msra.mxu0 %v324
    %401 = vmatpush.bf16.msra.mxu0 %v323
    %402 = vmatpush.bf16.msra.mxu0 %v322
    %403 = vmatpush.bf16.msra.mxu0 %v321
    %404 = vmatpush.bf16.msra.mxu0 %v320
    %405 = vmatpush.bf16.msra.mxu0 %v319
    %406 = vmatmul.bf16.gmra.mxu0 %v162
    %v407 = vpop.f32.mrf.mxu0
    %v408 = vadd.f32 %v395, %v407
    %v409 = vpop.f32.mrf.mxu0
    %410 = vdwg.mxu0
    %v411 = vld [vmem:[#allocation7] sm:$0xf]
    %v412 = vunpack.c.l.bf16 %v411
    %v413 = vmul.f32 %v408, %v412
    %v414 = vpack.c.bf16 %v413, %v413
    %v415 = vld [vmem:[#allocation8] sm:$0xf]
    %v416 = vld [vmem:[#allocation8 + $0x4] sm:$0xf]
    %v417 = vld [vmem:[#allocation8 + $0x8] sm:$0xf]
    %v418 = vld [vmem:[#allocation8 + $0xc] sm:$0xf]
    %v419 = vld [vmem:[#allocation8 + $0x10] sm:$0xf]
    %v420 = vld [vmem:[#allocation8 + $0x14] sm:$0xf]
    %v421 = vld [vmem:[#allocation8 + $0x18] sm:$0xf]
    %v422 = vld [vmem:[#allocation8 + $0x1c] sm:$0xf]
    %v423 = vld [vmem:[#allocation8 + $0x20] sm:$0xf]
    %v424 = vld [vmem:[#allocation8 + $0x24] sm:$0xf]
    %v425 = vld [vmem:[#allocation8 + $0x28] sm:$0xf]
    %v426 = vld [vmem:[#allocation8 + $0x2c] sm:$0xf]
    %v427 = vld [vmem:[#allocation8 + $0x30] sm:$0xf]
    %v428 = vld [vmem:[#allocation8 + $0x34] sm:$0xf]
    %v429 = vld [vmem:[#allocation8 + $0x38] sm:$0xf]
    %v430 = vld [vmem:[#allocation8 + $0x3c] sm:$0xf]
    %v431 = vld [vmem:[%s5] sm:$0x1]
    %v433 = vperm.slane %v431, 0
    %v451 = vunpack.c.l.b16 %v415
    %v452 = vunpack.c.l.b16 %v416
    %v453 = vunpack.c.l.b16 %v417
    %v454 = vunpack.c.l.b16 %v418
    %v455 = vunpack.c.l.b16 %v419
    %v456 = vunpack.c.l.b16 %v420
    %v457 = vunpack.c.l.b16 %v421
    %v458 = vunpack.c.l.b16 %v422
    %v459 = vunpack.c.l.b16 %v423
    %v460 = vunpack.c.l.b16 %v424
    %v461 = vunpack.c.l.b16 %v425
    %v462 = vunpack.c.l.b16 %v426
    %v463 = vunpack.c.l.b16 %v427
    %v464 = vunpack.c.l.b16 %v428
    %v465 = vunpack.c.l.b16 %v429
    %v466 = vunpack.c.l.b16 %v430
    %v467 = vpack.c.b16 %v452, %v451
    %v468 = vpack.c.b16 %v454, %v453
    %v469 = vpack.c.b16 %v456, %v455
    %v470 = vpack.c.b16 %v458, %v457
    %v471 = vpack.c.b16 %v460, %v459
    %v472 = vpack.c.b16 %v462, %v461
    %v473 = vpack.c.b16 %v464, %v463
    %v474 = vpack.c.b16 %v466, %v465
    %483 = vmatpush.bf16.msra.mxu0 %v474
    %484 = vmatpush.bf16.msra.mxu0 %v473
    %485 = vmatpush.bf16.msra.mxu0 %v472
    %486 = vmatpush.bf16.msra.mxu0 %v471
    %487 = vmatpush.bf16.msra.mxu0 %v470
    %488 = vmatpush.bf16.msra.mxu0 %v469
    %489 = vmatpush.bf16.msra.mxu0 %v468
    %490 = vmatpush.bf16.msra.mxu0 %v467
    %491 = vmatmul.bf16.gmra.mxu0 %v414
    %v492 = vpop.f32.mrf.mxu0
    %v493 = vadd.f32 %v433, %v492
    %v494 = vpop.f32.mrf.mxu0
    %495 = vdwg.mxu0
    %496 = vst [vmem:[#allocation10] sm:$0xff] %v493
    // Predicated region
    $region42: #{tpu_custom_call.1} parent=1 // pred_check
      _
    $region43: #{tpu_custom_call.1} parent=1 // pred_check_branch
      %498 = sbr.rel (0) target = $region45
    $region44: #{tpu_custom_call.1} parent=1 // pred_region
      %500 = vsyncadd [#allocation4], 0
      %s502 = sshll.u32 [#allocation10], 4
      %s503 = int_to_ptr.vmem [resolvable:$true] %s502
      %s504 = sshll.u32 %s6, 4
      %s505 = int_to_ptr.hbm [resolvable:$true] %s504
      %507 = dma.vmem_to_hbm [thread:$0]  %s503, 128, %s505, [#allocation4]
    $region45: #{tpu_custom_call.1} parent=1 // pred_fallthru
      _
    // Predicated region
    $region46: #{tpu_custom_call.1} parent=1 // pred_check
      _
    $region47: #{tpu_custom_call.1} parent=1 // pred_check_branch
      %509 = sbr.rel (0) target = $region49
    $region48: #{tpu_custom_call.1} parent=1 // pred_region
      %511 = dma.done [#allocation4], 128
    $region49: #{tpu_custom_call.1} parent=1 // pred_fallthru
      _
    %512 = vsyncpa [#allocation3], 1
    %513 = vsyncpa [#allocation6], 1
    %514 = vsyncpa [#allocation9], 1
    %515 = vsyncpa [#allocation4], 1

</llo_original>
